<compile_context>
chip_gen: v6e
topology: v6e:2x2x1
jax: 0.10.0
libtpu: 0.0.40
codegen_flags: <defaults>
</compile_context>

<pallas_src>
import functools

import jax
import jax.numpy as jnp
from jax import lax
from jax.experimental import pallas as pl
from jax.experimental.pallas import tpu as pltpu


def _layernorm_kernel(x_ref, w_ref, *rest, eps, bias_free, inv_c):
    if bias_free:
        (o_ref,) = rest
        b_ref = None
    else:
        b_ref, o_ref = rest

    # x block: (tb, C, t_hw) -> channels on sublanes, pixels on lanes.
    x = x_ref[...].astype(jnp.float32)

    # One-pass statistics: a single read of the tile feeds both sums.
    s1 = jnp.sum(x, axis=1, keepdims=True)                   # (tb, 1, t_hw)
    s2 = jnp.sum(x * x, axis=1, keepdims=True)               # (tb, 1, t_hw)
    mu = s1 * inv_c
    var = jnp.maximum(s2 * inv_c - mu * mu, 0.0)             # biased var (torch unbiased=False)
    inv = lax.rsqrt(var + eps)                               # EUP slot

    w = w_ref[...].astype(jnp.float32)                       # (1, C, 1)
    if bias_free:
        # BiasFree_LayerNorm: x / sqrt(var + eps) * weight   (x NOT mean-centered)
        y = x * (inv * w)
    else:
        # WithBias_LayerNorm: (x - mu) / sqrt(var + eps) * weight + bias
        y = (x - mu) * (inv * w) + b_ref[...].astype(jnp.float32)
    o_ref[...] = y.astype(o_ref.dtype)


def _plan_tiles(B, C, HW, itemsize, *, target_bytes=1 << 20,
                min_bytes=256 << 10, min_steps=8):
    """Pick (tb, t_hw, c_pad): batch block, spatial tile (multiple of 128 or
    full extent), and the sublane-padded channel count used for VMEM math."""
    if itemsize == 2:
        subl = 16
    elif itemsize == 1:
        subl = 32
    else:
        subl = 8
    c_pad = ((C + subl - 1) // subl) * subl
    col_bytes = c_pad * 128 * itemsize            # bytes of one (c_pad, 128) lane tile
    hw_tiles = (HW + 127) // 128                  # HW in 128-lane units

    budget_tiles = max(1, target_bytes // col_bytes)          # ~1 MiB blocks
    floor_tiles = max(1, min_bytes // col_bytes)               # amortize per-step overhead
    steps_wanted = max(1, (min_steps + B - 1) // B)            # keep >= min_steps for megacore
    steps_tiles = max(1, (hw_tiles + steps_wanted - 1) // steps_wanted)

    n = min(hw_tiles, budget_tiles, max(steps_tiles, floor_tiles))

    if n >= hw_tiles:
        # Spatial tile covers the whole image: full-extent block (valid even
        # when HW % 128 != 0).  If still tiny, block several batches per step.
        t_hw = HW
        block_bytes = c_pad * hw_tiles * 128 * itemsize
        tb = 1
        if block_bytes < min_bytes:
            tb = min(B,
                     max(1, min_bytes // block_bytes),
                     max(1, target_bytes // block_bytes))
    else:
        t_hw = n * 128
        tb = 1
    return tb, t_hw, c_pad


def _vmem_cap_bytes():
    """~3/4 of physical VMEM per core (48 MiB on v7x, more on v5e/v6e)."""
    cap = 64 << 20  # conservative fallback: v7x per-TensorCore VMEM
    try:
        info = pltpu.get_tpu_info()
        cap = int(getattr(info, "vmem_capacity_bytes", cap))
    except Exception:
        pass
    return max(16 << 20, min((cap * 3) // 4, 96 << 20))


def layernorm_pallas(x_nchw, weight, bias=None, *, layernorm_type="WithBias", eps=1e-5):
    """x_nchw: (B, C, H, W). weight/bias: (C,). Matches the PyTorch LayerNorm module."""
    B, C, H, W = x_nchw.shape
    HW = H * W
    bias_free = (layernorm_type == "BiasFree")
    itemsize = jnp.dtype(x_nchw.dtype).itemsize

    # Free reshapes only (trailing-dim collapse) -- no HBM layout passes.
    x3 = x_nchw.reshape(B, C, HW)
    w3 = weight.reshape(1, C, 1).astype(jnp.float32)

    tb, t_hw, c_pad = _plan_tiles(B, C, HW, itemsize)
    grid = (pl.cdiv(B, tb), pl.cdiv(HW, t_hw))

    # VMEM budget with sublane/lane padding: double-buffered in + out blocks,
    # params, plus internal-scratch headroom.
    lane_tiles = (t_hw + 127) // 128
    block_bytes = tb * c_pad * lane_tiles * 128 * itemsize
    params_bytes = 4 * c_pad * 128 * 4
    needed = 4 * block_bytes + params_bytes + (2 << 20)
    vmem_limit = int(min(max(needed, 16 << 20), _vmem_cap_bytes()))

    in_specs = [
        pl.BlockSpec((tb, C, t_hw), lambda b, s: (b, 0, s)),   # x tile (lane-dense)
        pl.BlockSpec((1, C, 1), lambda b, s: (0, 0, 0)),       # weight
    ]
    args = [x3, w3]
    if not bias_free:
        if bias is None:
            bias = jnp.zeros((C,), jnp.float32)
        in_specs.append(pl.BlockSpec((1, C, 1), lambda b, s: (0, 0, 0)))
        args.append(bias.reshape(1, C, 1).astype(jnp.float32))

    kernel = functools.partial(_layernorm_kernel, eps=eps, bias_free=bias_free,
                               inv_c=1.0 / C)

    out3 = pl.pallas_call(
        kernel,
        out_shape=jax.ShapeDtypeStruct((B, C, HW), x_nchw.dtype),
        grid_spec=pltpu.PrefetchScalarGridSpec(
            num_scalar_prefetch=0,
            grid=grid,
            in_specs=in_specs,
            out_specs=pl.BlockSpec((tb, C, t_hw), lambda b, s: (b, 0, s)),
        ),
        compiler_params=pltpu.CompilerParams(
            dimension_semantics=("parallel", "parallel"),
            vmem_limit_bytes=vmem_limit,
        ),
    )(*args)

    return out3.reshape(B, C, H, W)


def layernorm_ref(x_nchw, weight, bias, *, layernorm_type="WithBias", eps=1e-5):
    """Pure-JAX reference mirroring the PyTorch module (to_3d -> LN over C -> to_4d)."""
    x = jnp.transpose(x_nchw, (0, 2, 3, 1)).astype(jnp.float32)   # (B, H, W, C)
    mu = x.mean(-1, keepdims=True)
    var = ((x - mu) ** 2).mean(-1, keepdims=True)
    if layernorm_type == "BiasFree":
        y = x / jnp.sqrt(var + eps) * weight
    else:
        y = (x - mu) / jnp.sqrt(var + eps) * weight + bias
    return jnp.transpose(y, (0, 3, 1, 2)).astype(x_nchw.dtype)


if __name__ == "__main__":
    key = jax.random.PRNGKey(0)
    B, C, H, W = 2, 4, 16, 16

    kx, kw, kb = jax.random.split(key, 3)
    x = jax.random.normal(kx, (B, C, H, W), jnp.float32)
    weight = 1.0 + 0.5 * jax.random.normal(kw, (C,), jnp.float32)
    bias = 0.1 * jax.random.normal(kb, (C,), jnp.float32)

    # WithBias variant
    out_wb = jax.block_until_ready(layernorm_pallas(x, weight, bias, layernorm_type="WithBias"))
    ref_wb = layernorm_ref(x, weight, bias, layernorm_type="WithBias")
    assert out_wb.shape == (B, C, H, W)
    assert jnp.allclose(out_wb, ref_wb, atol=1e-4, rtol=1e-4)

    # BiasFree variant (no bias buffer passed to the kernel)
    out_bf = jax.block_until_ready(layernorm_pallas(x, weight, None, layernorm_type="BiasFree"))
    ref_bf = layernorm_ref(x, weight, jnp.zeros((C,), jnp.float32), layernorm_type="BiasFree")
    assert out_bf.shape == (B, C, H, W)
    assert jnp.allclose(out_bf, ref_bf, atol=1e-4, rtol=1e-4)

    # Non-128-divisible spatial extent / odd channel count (full-extent block path)
    x2 = jax.random.normal(kx, (1, 6, 20, 20), jnp.float32)
    w2 = 1.0 + 0.5 * jax.random.normal(kw, (6,), jnp.float32)
    b2 = 0.1 * jax.random.normal(kb, (6,), jnp.float32)
    out2 = jax.block_until_ready(layernorm_pallas(x2, w2, b2, layernorm_type="WithBias"))
    ref2 = layernorm_ref(x2, w2, b2, layernorm_type="WithBias")
    assert jnp.allclose(out2, ref2, atol=1e-4, rtol=1e-4)

    print("KERNEL_OK")
</pallas_src>

<mosaic_0001>
module attributes {stable_mosaic.version = 11 : i64} {
  func.func @_layernorm_kernel(%arg0: i32, %arg1: i32, %arg2: memref<2x4x256xf32, #tpu.memory_space<vmem>>, %arg3: memref<1x4x1xf32, #tpu.memory_space<vmem>>, %arg4: memref<1x4x1xf32, #tpu.memory_space<vmem>>, %arg5: memref<2x4x256xf32, #tpu.memory_space<vmem>>) attributes {dimension_semantics = [#tpu.dimension_semantics<parallel>, #tpu.dimension_semantics<parallel>], iteration_bounds = array<i64: 1, 1>, scalar_prefetch = 0 : i64, scratch_operands = 0 : i64, tpu.core_type = #tpu.core_type<tc>, window_params = [{transform_indices = @transform_0, window_bounds = array<i64: 2, 4, 256>}, {pipeline_mode = #tpu.pipeline_mode<synchronous>, transform_indices = @transform_1, window_bounds = array<i64: 1, 4, 1>}, {pipeline_mode = #tpu.pipeline_mode<synchronous>, transform_indices = @transform_2, window_bounds = array<i64: 1, 4, 1>}, {transform_indices = @transform_3, window_bounds = array<i64: 2, 4, 256>}]} {
    %c0 = arith.constant 0 : index
    %c0_0 = arith.constant 0 : index
    %c0_1 = arith.constant 0 : index
    %0 = vector.load %arg2[%c0, %c0_0, %c0_1] : memref<2x4x256xf32, #tpu.memory_space<vmem>>, vector<2x4x256xf32>
    %cst = arith.constant dense<0.000000e+00> : vector<2x256xf32>
    %1 = vector.multi_reduction <add>, %0, %cst [1] : vector<2x4x256xf32> to vector<2x256xf32>
    %2 = vector.shape_cast %1 : vector<2x256xf32> to vector<2x1x256xf32>
    %3 = arith.mulf %0, %0 : vector<2x4x256xf32>
    %cst_2 = arith.constant dense<0.000000e+00> : vector<2x256xf32>
    %4 = vector.multi_reduction <add>, %3, %cst_2 [1] : vector<2x4x256xf32> to vector<2x256xf32>
    %5 = vector.shape_cast %4 : vector<2x256xf32> to vector<2x1x256xf32>
    %cst_3 = arith.constant 2.500000e-01 : f32
    %6 = vector.broadcast %cst_3 : f32 to vector<2x1x256xf32>
    %7 = arith.mulf %2, %6 : vector<2x1x256xf32>
    %cst_4 = arith.constant 2.500000e-01 : f32
    %8 = vector.broadcast %cst_4 : f32 to vector<2x1x256xf32>
    %9 = arith.mulf %5, %8 : vector<2x1x256xf32>
    %10 = arith.mulf %7, %7 : vector<2x1x256xf32>
    %11 = arith.subf %9, %10 : vector<2x1x256xf32>
    %cst_5 = arith.constant 0.000000e+00 : f32
    %12 = vector.broadcast %cst_5 : f32 to vector<2x1x256xf32>
    %13 = arith.maximumf %11, %12 : vector<2x1x256xf32>
    %cst_6 = arith.constant 9.99999974E-6 : f32
    %14 = vector.broadcast %cst_6 : f32 to vector<2x1x256xf32>
    %15 = arith.addf %13, %14 : vector<2x1x256xf32>
    %16 = math.rsqrt %15 : vector<2x1x256xf32>
    %c0_7 = arith.constant 0 : index
    %c0_8 = arith.constant 0 : index
    %c0_9 = arith.constant 0 : index
    %17 = vector.load %arg3[%c0_7, %c0_8, %c0_9] : memref<1x4x1xf32, #tpu.memory_space<vmem>>, vector<1x4x1xf32>
    %18 = vector.broadcast %7 : vector<2x1x256xf32> to vector<2x4x256xf32>
    %19 = arith.subf %0, %18 : vector<2x4x256xf32>
    %20 = vector.broadcast %16 : vector<2x1x256xf32> to vector<2x4x256xf32>
    %21 = vector.broadcast %17 : vector<1x4x1xf32> to vector<2x4x256xf32>
    %22 = arith.mulf %20, %21 : vector<2x4x256xf32>
    %23 = arith.mulf %19, %22 : vector<2x4x256xf32>
    %c0_10 = arith.constant 0 : index
    %c0_11 = arith.constant 0 : index
    %c0_12 = arith.constant 0 : index
    %24 = vector.load %arg4[%c0_10, %c0_11, %c0_12] : memref<1x4x1xf32, #tpu.memory_space<vmem>>, vector<1x4x1xf32>
    %25 = vector.broadcast %24 : vector<1x4x1xf32> to vector<2x4x256xf32>
    %26 = arith.addf %23, %25 : vector<2x4x256xf32>
    %c0_13 = arith.constant 0 : index
    %c0_14 = arith.constant 0 : index
    %c0_15 = arith.constant 0 : index
    %27 = vector.load %arg5[%c0_13, %c0_14, %c0_15] : memref<2x4x256xf32, #tpu.memory_space<vmem>>, vector<2x4x256xf32>
    tpu.vector_store %arg5[%c0_13, %c0_14, %c0_15], %26 {strides = array<i32>} : memref<2x4x256xf32, #tpu.memory_space<vmem>>, vector<2x4x256xf32>,
    return
  }
  func.func @transform_0(%arg0: i32, %arg1: i32) -> (i32, i32, i32) {
    %c0_i32 = arith.constant 0 : i32
    %c0_i32_0 = arith.constant 0 : i32
    return %arg0, %c0_i32, %arg1 : i32, i32, i32
  }
  func.func @transform_1(%arg0: i32, %arg1: i32) -> (i32, i32, i32) {
    %c0_i32 = arith.constant 0 : i32
    %c0_i32_0 = arith.constant 0 : i32
    %c0_i32_1 = arith.constant 0 : i32
    %c0_i32_2 = arith.constant 0 : i32
    return %c0_i32, %c0_i32_0, %c0_i32_1 : i32, i32, i32
  }
  func.func @transform_2(%arg0: i32, %arg1: i32) -> (i32, i32, i32) {
    %c0_i32 = arith.constant 0 : i32
    %c0_i32_0 = arith.constant 0 : i32
    %c0_i32_1 = arith.constant 0 : i32
    %c0_i32_2 = arith.constant 0 : i32
    return %c0_i32, %c0_i32_0, %c0_i32_1 : i32, i32, i32
  }
  func.func @transform_3(%arg0: i32, %arg1: i32) -> (i32, i32, i32) {
    %c0_i32 = arith.constant 0 : i32
    %c0_i32_0 = arith.constant 0 : i32
    return %arg0, %c0_i32, %arg1 : i32, i32, i32
  }
}

</mosaic_0001>

<llo_original>
// kernel: tpu_custom_call.1
$region0: #{tpu_custom_call.1}
  #allocation0 [shape = 'u32[]', space=smem, size = 0x4, offset = 0x4, fixed_abs, tag = 'smem constant byte address 0x4 - core index']
  #allocation1 [shape = 'u32[144,128]{1,0:T(1,128)}', space=vmem, size = 0x12000, scoped, tag = 'internal scratch']
  %s0 = inlined_call_operand.hbm [shape: f32[2,4,256], index: 0, kind: input, shape index: {}]
  %s1 = inlined_call_operand.vmem [shape: f32[1,4,1], index: 1, kind: input, shape index: {}]
  %s2 = inlined_call_operand.vmem [shape: f32[1,4,1], index: 2, kind: input, shape index: {}]
  %s3 = inlined_call_operand.hbm [shape: f32[2,4,256], index: 3, kind: output, shape index: {}]
  %s4 = sld [smem:[#allocation0]]
  $region26: #{tpu_custom_call.1} parent=0
    _
  %s6 = ssub.s32 1, %s4
  %s7 = scalar_select 0, %s6, %s4
  $region1: #{tpu_custom_call.1} parent=0
    #allocation2 [shape = 'u8[8192]{0}', space=vmem, size = 0x2000, scoped, tag = 'input window, operand 0, single buffered']
    #allocation3 [shape = 's32[1]{0}', space=sflag, size = 0x4, scoped, tag = 'scoped memory for tpu_custom_call.1']
    #allocation4 [shape = 's32[1]{0}', space=sflag, size = 0x4, scoped, tag = 'scoped memory for tpu_custom_call.1']
    #allocation5 [shape = 'u8[8192]{0}', space=vmem, size = 0x2000, scoped, tag = 'output window, operand 0, single buffered']
    %8 = vsyncpa [#allocation3], 0
    %9 = vsyncpa [#allocation4], 0
    // Predicated region
    $region2: #{tpu_custom_call.1} parent=1 // pred_check
      _
    $region3: #{tpu_custom_call.1} parent=1 // pred_check_branch
      %11 = sbr.rel (0) target = $region5
    $region4: #{tpu_custom_call.1} parent=1 // pred_region
      %s13 = ssub.s32 256, 256
      %14 = vsyncadd [#allocation3], %s13
      %s15 = sshll.u32 [#allocation2], 4
      %s16 = int_to_ptr.vmem [resolvable:$true] %s15
      %21 = dma.hbm_to_vmem [thread:$0]  %s0, 256, %s16, [#allocation3], 128, 128, 8
    $region5: #{tpu_custom_call.1} parent=1 // pred_fallthru
      _
    // Predicated region
    $region6: #{tpu_custom_call.1} parent=1 // pred_check
      _
    $region7: #{tpu_custom_call.1} parent=1 // pred_check_branch
      %23 = sbr.rel (0) target = $region9
    $region8: #{tpu_custom_call.1} parent=1 // pred_region
      _
    $region9: #{tpu_custom_call.1} parent=1 // pred_fallthru
      _
    // Predicated region
    $region10: #{tpu_custom_call.1} parent=1 // pred_check
      _
    $region11: #{tpu_custom_call.1} parent=1 // pred_check_branch
      %25 = sbr.rel (0) target = $region13
    $region12: #{tpu_custom_call.1} parent=1 // pred_region
      _
    $region13: #{tpu_custom_call.1} parent=1 // pred_fallthru
      _
    // Predicated region
    $region14: #{tpu_custom_call.1} parent=1 // pred_check
      _
    $region15: #{tpu_custom_call.1} parent=1 // pred_check_branch
      %27 = sbr.rel (0) target = $region17
    $region16: #{tpu_custom_call.1} parent=1 // pred_region
      %28 = dma.done [#allocation3], 256
    $region17: #{tpu_custom_call.1} parent=1 // pred_fallthru
      _
    %v29 = vld [vmem:[#allocation2] sm:$0xff]
    %v30 = vld [vmem:[#allocation2 + $0x8] sm:$0xff]
    %v33 = vcombine.high %v29, %v29
    %v34 = vcombine.high %v30, %v30
    %vm37 = vcmask 1043456
    %v38 = vsel %vm37, %v29, 0.0
    %v39 = vrot.slane %v38, 4
    %v40 = vadd.f32 %v38, %v39
    %v41 = vrot.slane %v40, 2
    %v42 = vadd.f32 %v40, %v41
    %v43 = vrot.slane %v42, 1
    %v44 = vadd.f32 %v42, %v43
    %v45 = vsel %vm37, %v33, 0.0
    %v46 = vrot.slane %v45, 4
    %v47 = vadd.f32 %v45, %v46
    %v48 = vrot.slane %v47, 2
    %v49 = vadd.f32 %v47, %v48
    %v50 = vrot.slane %v49, 1
    %v51 = vadd.f32 %v49, %v50
    %v52 = vsel %vm37, %v30, 0.0
    %v53 = vrot.slane %v52, 4
    %v54 = vadd.f32 %v52, %v53
    %v55 = vrot.slane %v54, 2
    %v56 = vadd.f32 %v54, %v55
    %v57 = vrot.slane %v56, 1
    %v58 = vadd.f32 %v56, %v57
    %v59 = vsel %vm37, %v34, 0.0
    %v60 = vrot.slane %v59, 4
    %v61 = vadd.f32 %v59, %v60
    %v62 = vrot.slane %v61, 2
    %v63 = vadd.f32 %v61, %v62
    %v64 = vrot.slane %v63, 1
    %v65 = vadd.f32 %v63, %v64
    %v66 = vmul.f32 %v29, %v29
    %v67 = vmul.f32 %v30, %v30
    %v70 = vcombine.high %v66, %v66
    %v71 = vcombine.high %v67, %v67
    %v74 = vsel %vm37, %v66, 0.0
    %v75 = vrot.slane %v74, 4
    %v76 = vadd.f32 %v74, %v75
    %v77 = vrot.slane %v76, 2
    %v78 = vadd.f32 %v76, %v77
    %v79 = vrot.slane %v78, 1
    %v80 = vadd.f32 %v78, %v79
    %v81 = vsel %vm37, %v70, 0.0
    %v82 = vrot.slane %v81, 4
    %v83 = vadd.f32 %v81, %v82
    %v84 = vrot.slane %v83, 2
    %v85 = vadd.f32 %v83, %v84
    %v86 = vrot.slane %v85, 1
    %v87 = vadd.f32 %v85, %v86
    %v88 = vsel %vm37, %v67, 0.0
    %v89 = vrot.slane %v88, 4
    %v90 = vadd.f32 %v88, %v89
    %v91 = vrot.slane %v90, 2
    %v92 = vadd.f32 %v90, %v91
    %v93 = vrot.slane %v92, 1
    %v94 = vadd.f32 %v92, %v93
    %v95 = vsel %vm37, %v71, 0.0
    %v96 = vrot.slane %v95, 4
    %v97 = vadd.f32 %v95, %v96
    %v98 = vrot.slane %v97, 2
    %v99 = vadd.f32 %v97, %v98
    %v100 = vrot.slane %v99, 1
    %v101 = vadd.f32 %v99, %v100
    %v102 = vmul.f32 %v44, 0.25
    %v103 = vmul.f32 %v51, 0.25
    %v104 = vmul.f32 %v58, 0.25
    %v105 = vmul.f32 %v65, 0.25
    %v106 = vmul.f32 %v80, 0.25
    %v107 = vmul.f32 %v87, 0.25
    %v108 = vmul.f32 %v94, 0.25
    %v109 = vmul.f32 %v101, 0.25
    %v110 = vmul.f32 %v102, %v102
    %v111 = vmul.f32 %v103, %v103
    %v112 = vmul.f32 %v104, %v104
    %v113 = vmul.f32 %v105, %v105
    %v114 = vsub.f32 %v106, %v110
    %v115 = vsub.f32 %v107, %v111
    %v116 = vsub.f32 %v108, %v112
    %v117 = vsub.f32 %v109, %v113
    %v118 = vmax.f32 %v114, 0.0
    %v119 = vmax.f32 %v115, 0.0
    %v120 = vmax.f32 %v116, 0.0
    %v121 = vmax.f32 %v117, 0.0
    %v122 = vadd.f32 %v118, 1e-05
    %v123 = vadd.f32 %v119, 1e-05
    %v124 = vadd.f32 %v120, 1e-05
    %v125 = vadd.f32 %v121, 1e-05
    %v126 = vrsqrt.pop %v122
    %v127 = vrsqrt.pop %v123
    %v128 = vrsqrt.pop %v124
    %v129 = vrsqrt.pop %v125
    %v130 = vld [vmem:[%s1] sm:$0xf]
    %v135 = vcombine.low %v102, %v103
    %v136 = vcombine.low %v104, %v105
    %v139 = vsub.f32 %v29, %v135
    %v140 = vsub.f32 %v30, %v136
    %142 = vset.pattern.permute.xlu0 0
    %143 = vperm.xlu0 %142, %v130
    %v144 = vpop.permute.xlu0 %143
    %v146 = vmul.f32 %v126, %v144
    %v147 = vmul.f32 %v127, %v144
    %v148 = vmul.f32 %v128, %v144
    %v149 = vmul.f32 %v129, %v144
    %v154 = vcombine.low %v146, %v147
    %v155 = vcombine.low %v148, %v149
    %v158 = vmul.f32 %v139, %v154
    %v159 = vmul.f32 %v140, %v155
    %v160 = vld [vmem:[%s2] sm:$0xf]
    %162 = vset.pattern.permute.xlu0 0
    %163 = vperm.xlu0 %162, %v160
    %v164 = vpop.permute.xlu0 %163
    %v166 = vunpack.c.l.s4 839922192
    %v167 = vunpack.c.0.s8 %v166
    %v168 = vlaneseq
    %v169 = vshrl.u32 %v168, 7
    %v170 = vsub.s32 %v167, %v169
    %v171 = vrot.slane %v164, %v170
    %v173 = vadd.f32 %v158, %v171
    %v174 = vadd.f32 %v159, %v171
    %175 = vst [vmem:[#allocation5] sm:$0xff] %v173
    %176 = vst [vmem:[#allocation5 + $0x8] sm:$0xff] %v174
    // Predicated region
    $region18: #{tpu_custom_call.1} parent=1 // pred_check
      _
    $region19: #{tpu_custom_call.1} parent=1 // pred_check_branch
      %178 = sbr.rel (0) target = $region21
    $region20: #{tpu_custom_call.1} parent=1 // pred_region
      %s180 = ssub.s32 256, 256
      %181 = vsyncadd [#allocation4], %s180
      %s182 = sshll.u32 [#allocation5], 4
      %s183 = int_to_ptr.vmem [resolvable:$true] %s182
      %188 = dma.vmem_to_hbm [thread:$0]  %s183, 256, %s3, [#allocation4], 128, 128, 8
    $region21: #{tpu_custom_call.1} parent=1 // pred_fallthru
      _
    // Predicated region
    $region22: #{tpu_custom_call.1} parent=1 // pred_check
      _
    $region23: #{tpu_custom_call.1} parent=1 // pred_check_branch
      %190 = sbr.rel (0) target = $region25
    $region24: #{tpu_custom_call.1} parent=1 // pred_region
      %191 = dma.done [#allocation4], 256
    $region25: #{tpu_custom_call.1} parent=1 // pred_fallthru
      _
    %192 = vsyncpa [#allocation3], 1
    %193 = vsyncpa [#allocation4], 1

</llo_original>
